<compile_context>
chip_gen: v5e
topology: v5e:2x2
jax: 0.10.0
libtpu: 0.0.40
codegen_flags: <defaults>
</compile_context>

<pallas_src>
import numpy as np
import jax
import jax.numpy as jnp
from jax import lax
from jax.experimental import pallas as pl
from jax.experimental.pallas import tpu as pltpu

NUM_CATEGORIES = 4
EMBED_DIM = 2
H1, H2, H3, H4, OUT = 32, 16, 64, 32, 3
OUT_PAD = 128          # lane-dense output slab width
BN_EPS = 1e-5


# --------------------------------------------------------------------------------------
# Kernel
# --------------------------------------------------------------------------------------
def deepsets_kernel(rows_ref, lset_ref,
                    e1p_ref, e1q_ref, w1d_ref, c1_ref,
                    w2_ref, c2_ref,
                    w3_ref, b3_ref, w4_ref, b4_ref,
                    w5_ref, b5_ref,
                    out_ref):
    f32 = jnp.float32
    R = rows_ref.shape[0]          # rows in this tile = TB * L
    TB = lset_ref.shape[0]         # sets in this tile
    L = R // TB                    # (padded) max set length

    rows = rows_ref[...]           # (R, 4): [pre, post, dt, 0]; pre/post are 1-based f32
    pre = rows[:, 0:1]
    post = rows[:, 1:2]
    dt = rows[:, 2:3]

    # ---- fc1 with folded embedding / bias / bn1 (eval) --------------------------------
    # Each category-table lookup is a 3-deep select chain (categories are exactly 1..4
    # as small-integer floats) followed by a single add.  Keeps the K=4 contraction on
    # the VPU; the MXU stays free for fc2..fc5.
    e1p = e1p_ref[...]             # (4, H1) = (emb @ W1_pre)  * bn1_scale
    e1q = e1q_ref[...]             # (4, H1) = (emb @ W1_post) * bn1_scale
    pe = jnp.where(pre == 1.0, e1p[0:1, :],
         jnp.where(pre == 2.0, e1p[1:2, :],
         jnp.where(pre == 3.0, e1p[2:3, :], e1p[3:4, :])))
    po = jnp.where(post == 1.0, e1q[0:1, :],
         jnp.where(post == 2.0, e1q[1:2, :],
         jnp.where(post == 3.0, e1q[2:3, :], e1q[3:4, :])))
    h = dt * w1d_ref[...] + c1_ref[...] + pe + po             # (R, H1)
    h = jnp.maximum(h, 0.0)                                   # relu; dropout1 = id (eval)

    # ---- fc2 (+ folded bn2) + relu -----------------------------------------------------
    h = jnp.dot(h, w2_ref[...], preferred_element_type=f32) + c2_ref[...]
    h = jnp.maximum(h, 0.0)                                   # (R, H2); dropout2 = id

    # ---- masked mean over the set axis: reshape, 3-D iota mask, sublane segment-sum ----
    lens = lset_ref[...]                                      # (TB, 1) f32
    pos = lax.broadcasted_iota(jnp.int32, (TB, L, 1), 1).astype(f32)
    hm = jnp.where(pos < lens.reshape(TB, 1, 1), h.reshape(TB, L, H2), 0.0)
    x_sum = jnp.sum(hm, axis=1)                               # (TB, H2)
    # NOTE: zero-length sets give 0/0 = NaN, matching the reference (x_sum / 0).
    x_mean = x_sum / lens                                     # exact division (tiny op)

    # ---- head MLP (dropout3/4 = identity in eval) --------------------------------------
    h = jnp.maximum(jnp.dot(x_mean, w3_ref[...], preferred_element_type=f32) + b3_ref[...], 0.0)
    h = jnp.maximum(jnp.dot(h, w4_ref[...], preferred_element_type=f32) + b4_ref[...], 0.0)
    z = jnp.dot(h, w5_ref[...], preferred_element_type=f32) + b5_ref[...]   # (TB, 128)

    # softplus (PyTorch default beta=1, threshold=20); lane-dense 128-wide store.
    out_ref[...] = jnp.where(z > 20.0, z, jnp.log1p(jnp.exp(jnp.minimum(z, 20.0))))


# --------------------------------------------------------------------------------------
# Parameter handling
# --------------------------------------------------------------------------------------
def init_params(key):
    ks = jax.random.split(key, 8)

    def linear(k, fan_in, fan_out):
        kw, kb = jax.random.split(k)
        bound = 1.0 / np.sqrt(fan_in)
        w = jax.random.uniform(kw, (fan_in, fan_out), jnp.float32, -bound, bound)
        b = jax.random.uniform(kb, (1, fan_out), jnp.float32, -bound, bound)
        return w, b

    emb = jax.random.normal(ks[0], (NUM_CATEGORIES, EMBED_DIM), jnp.float32)
    w1, b1 = linear(ks[1], 2 * EMBED_DIM + 1, H1)       # (5, 32)
    w2, b2 = linear(ks[2], H1, H2)
    w3, b3 = linear(ks[3], H2, H3)
    w4, b4 = linear(ks[4], H3, H4)
    w5, b5 = linear(ks[5], H4, OUT)

    def bn(dim):  # freshly-initialized BatchNorm1d (eval-mode running stats)
        return (jnp.ones((1, dim), jnp.float32), jnp.zeros((1, dim), jnp.float32),
                jnp.zeros((1, dim), jnp.float32), jnp.ones((1, dim), jnp.float32))

    bn1_g, bn1_b, bn1_m, bn1_v = bn(H1)
    bn2_g, bn2_b, bn2_m, bn2_v = bn(H2)

    return dict(emb=emb, w1=w1, b1=b1,
                bn1_gamma=bn1_g, bn1_beta=bn1_b, bn1_mean=bn1_m, bn1_var=bn1_v,
                w2=w2, b2=b2,
                bn2_gamma=bn2_g, bn2_beta=bn2_b, bn2_mean=bn2_m, bn2_var=bn2_v,
                w3=w3, b3=b3, w4=w4, b4=b4, w5=w5, b5=b5)


def fold_params(params):
    """Fold embedding->fc1, biases and eval-mode BatchNorm into the kernel weights."""
    f32 = jnp.float32
    s1 = params["bn1_gamma"] / jnp.sqrt(params["bn1_var"] + BN_EPS)       # (1, H1)
    sh1 = params["bn1_beta"] - params["bn1_mean"] * s1
    s2 = params["bn2_gamma"] / jnp.sqrt(params["bn2_var"] + BN_EPS)       # (1, H2)
    sh2 = params["bn2_beta"] - params["bn2_mean"] * s2

    w1 = params["w1"]                                                     # (5, H1)
    e1p = (params["emb"] @ w1[0:EMBED_DIM, :]) * s1                       # (4, H1)
    e1q = (params["emb"] @ w1[EMBED_DIM:2 * EMBED_DIM, :]) * s1           # (4, H1)
    w1d = w1[2 * EMBED_DIM:2 * EMBED_DIM + 1, :] * s1                     # (1, H1)
    c1 = params["b1"] * s1 + sh1                                          # (1, H1)

    w2s = params["w2"] * s2                                               # (H1, H2)
    c2 = params["b2"] * s2 + sh2                                          # (1, H2)

    # Zero-pad fc5 to a lane-dense 128-wide output slab.
    w5p = jnp.zeros((H4, OUT_PAD), f32).at[:, :OUT].set(params["w5"])
    b5p = jnp.zeros((1, OUT_PAD), f32).at[:, :OUT].set(params["b5"])

    return dict(e1p=e1p.astype(f32), e1q=e1q.astype(f32), w1d=w1d, c1=c1,
                w2s=w2s, c2=c2, w3=params["w3"], b3=params["b3"],
                w4=params["w4"], b4=params["b4"], w5p=w5p, b5p=b5p)


# --------------------------------------------------------------------------------------
# Wrapper
# --------------------------------------------------------------------------------------
def _pick_block_b(B, L_pad):
    """Sets per grid step.  Targets ~2-4K rows/step (per-step pipeline overhead
    ~0.35 us), halved on 64 MiB-VMEM parts (v7x); for B >= 16 the tile is capped so the
    'parallel' batch axis has >= 2 grid steps (v7x has 2 TensorCores)."""
    try:
        vmem_bytes = pltpu.get_tpu_info().vmem_capacity_bytes
    except Exception:                       # non-TPU trace / API drift: assume 128 MiB
        vmem_bytes = 128 << 20
    target_rows = 4096 if vmem_bytes > (96 << 20) else 2048
    tb = max(1, target_rows // max(L_pad, 1))
    if B >= 16:
        tb = min(tb, pl.cdiv(B, 2))
    if tb >= B:
        return B                            # single tile; block dims == full array dims
    tb = max(8, (tb // 8) * 8)              # tiled blocks: keep the set axis /8
    return B if tb >= B else tb


def deepsets_forward(state, delta_t, lengths, params, *, block_b=None):
    B, two, L = state.shape
    assert two == 2
    # Pad L to a multiple of 8 so the in-kernel (R,16)->(TB,L,16) reshape is a free
    # sublane regroup; padded positions are masked by the length mask.
    L_pad = ((L + 7) // 8) * 8
    TB = min(block_b, B) if block_b is not None else _pick_block_b(B, L_pad)
    grid = (pl.cdiv(B, TB),)

    fp = fold_params(params)      # tiny; in production fold once at model-load time

    # Wrapper-side layout plumbing: pack [pre, post, dt, 0] into ONE (B*L_pad, 4) array
    # (one DMA per grid step; 4x less lane-padded VMEM than separate (R,1) inputs).
    rows = jnp.stack([state[:, 0, :].astype(jnp.float32),
                      state[:, 1, :].astype(jnp.float32),
                      delta_t.astype(jnp.float32),
                      jnp.zeros((B, L), jnp.float32)], axis=-1)   # (B, L, 4)
    if L_pad != L:
        rows = jnp.pad(rows, ((0, 0), (0, L_pad - L), (0, 0)))
    rows = rows.reshape(B * L_pad, 4)
    len_set = lengths.astype(jnp.float32).reshape(B, 1)

    row_spec = pl.BlockSpec((TB * L_pad, 4), lambda i: (i, 0))
    set_spec = pl.BlockSpec((TB, 1), lambda i: (i, 0))

    def wspec(x):                                  # resident (constant-index) weights
        return pl.BlockSpec(x.shape, lambda i, _nd=x.ndim: (0,) * _nd)

    weights = (fp["e1p"], fp["e1q"], fp["w1d"], fp["c1"],
               fp["w2s"], fp["c2"],
               fp["w3"], fp["b3"], fp["w4"], fp["b4"],
               fp["w5p"], fp["b5p"])

    # NOTE: when B % TB != 0 the padded tail block processes unspecified rows/lengths;
    # every row/set is independent (no cross-set matmul) and out-of-range output rows
    # are dropped by Pallas, so valid outputs are unaffected.
    out = pl.pallas_call(
        deepsets_kernel,
        grid=grid,
        in_specs=[row_spec, set_spec] + [wspec(w) for w in weights],
        out_specs=pl.BlockSpec((TB, OUT_PAD), lambda i: (i, 0)),
        out_shape=jax.ShapeDtypeStruct((B, OUT_PAD), jnp.float32),
        compiler_params=pltpu.CompilerParams(
            dimension_semantics=("parallel",),
            vmem_limit_bytes=32 << 20),          # explicit budget (raises v5e's 16 MiB)
    )(rows, len_set, *weights)

    return out[:, :OUT]


# --------------------------------------------------------------------------------------
# Pure-JAX reference of the PyTorch forward (eval mode), using the un-folded params.
# --------------------------------------------------------------------------------------
def reference_forward(state, delta_t, lengths, params):
    B, _, L = state.shape
    pre = state[:, 0, :].astype(jnp.int32) - 1
    post = state[:, 1, :].astype(jnp.int32) - 1
    pe = params["emb"][pre]
    po = params["emb"][post]
    x = jnp.concatenate([pe, po, delta_t[..., None]], axis=2).reshape(B * L, -1)

    def bn(y, g, b, m, v):
        return (y - m) / jnp.sqrt(v + BN_EPS) * g + b

    h = x @ params["w1"] + params["b1"]
    h = jnp.maximum(bn(h, params["bn1_gamma"], params["bn1_beta"],
                       params["bn1_mean"], params["bn1_var"]), 0.0)
    h = h @ params["w2"] + params["b2"]
    h = jnp.maximum(bn(h, params["bn2_gamma"], params["bn2_beta"],
                       params["bn2_mean"], params["bn2_var"]), 0.0)
    h = h.reshape(B, L, -1)
    mask = (jnp.arange(L)[None, :] < lengths[:, None])[..., None].astype(jnp.float32)
    x_mean = (h * mask).sum(axis=1) / lengths[:, None].astype(jnp.float32)
    h = jnp.maximum(x_mean @ params["w3"] + params["b3"], 0.0)
    h = jnp.maximum(h @ params["w4"] + params["b4"], 0.0)
    z = h @ params["w5"] + params["b5"]
    return jnp.where(z > 20.0, z, jnp.log1p(jnp.exp(jnp.minimum(z, 20.0))))


if __name__ == "__main__":
    key = jax.random.PRNGKey(0)
    k_par, k_state, k_dt, k_state2, k_dt2, k_len2 = jax.random.split(key, 6)

    params = init_params(k_par)

    # ---- small smoke test (single tile) ------------------------------------------------
    B, L = 2, 8
    # categories are 1..NUM_CATEGORIES (the module does `pre.long() - 1`)
    state = jax.random.randint(k_state, (B, 2, L), 1, NUM_CATEGORIES + 1, dtype=jnp.int32)
    delta_t = jax.random.uniform(k_dt, (B, L), jnp.float32)
    lengths = jnp.array([L, 5], dtype=jnp.int32)

    out = jax.block_until_ready(deepsets_forward(state, delta_t, lengths, params))
    ref = reference_forward(state, delta_t, lengths, params)
    # Tolerance covers MXU-vs-XLA f32 matmul differences and the folded-BN reassociation.
    np.testing.assert_allclose(np.asarray(out), np.asarray(ref), rtol=2e-3, atol=2e-3)

    # ---- multi-tile test: L padding (7 -> 8), batch-tiled grid, partial tail block -----
    B2, L2 = 40, 7
    state2 = jax.random.randint(k_state2, (B2, 2, L2), 1, NUM_CATEGORIES + 1, dtype=jnp.int32)
    delta_t2 = jax.random.uniform(k_dt2, (B2, L2), jnp.float32)
    lengths2 = jax.random.randint(k_len2, (B2,), 1, L2 + 1, dtype=jnp.int32)

    out2 = jax.block_until_ready(deepsets_forward(state2, delta_t2, lengths2, params))
    ref2 = reference_forward(state2, delta_t2, lengths2, params)
    np.testing.assert_allclose(np.asarray(out2), np.asarray(ref2), rtol=2e-3, atol=2e-3)

    print("KERNEL_OK")
</pallas_src>

<mosaic_0001>
module attributes {stable_mosaic.version = 11 : i64} {
  func.func @deepsets_kernel(%arg0: i32, %arg1: memref<16x4xf32, #tpu.memory_space<vmem>>, %arg2: memref<2x1xf32, #tpu.memory_space<vmem>>, %arg3: memref<4x32xf32, #tpu.memory_space<vmem>>, %arg4: memref<4x32xf32, #tpu.memory_space<vmem>>, %arg5: memref<1x32xf32, #tpu.memory_space<vmem>>, %arg6: memref<1x32xf32, #tpu.memory_space<vmem>>, %arg7: memref<32x16xf32, #tpu.memory_space<vmem>>, %arg8: memref<1x16xf32, #tpu.memory_space<vmem>>, %arg9: memref<16x64xf32, #tpu.memory_space<vmem>>, %arg10: memref<1x64xf32, #tpu.memory_space<vmem>>, %arg11: memref<64x32xf32, #tpu.memory_space<vmem>>, %arg12: memref<1x32xf32, #tpu.memory_space<vmem>>, %arg13: memref<32x128xf32, #tpu.memory_space<vmem>>, %arg14: memref<1x128xf32, #tpu.memory_space<vmem>>, %arg15: memref<2x128xf32, #tpu.memory_space<vmem>>) attributes {dimension_semantics = [#tpu.dimension_semantics<parallel>], iteration_bounds = array<i64: 1>, scalar_prefetch = 0 : i64, scratch_operands = 0 : i64, tpu.core_type = #tpu.core_type<tc>, window_params = [{transform_indices = @transform_0, window_bounds = array<i64: 16, 4>}, {transform_indices = @transform_1, window_bounds = array<i64: 2, 1>}, {pipeline_mode = #tpu.pipeline_mode<synchronous>, transform_indices = @transform_2, window_bounds = array<i64: 4, 32>}, {pipeline_mode = #tpu.pipeline_mode<synchronous>, transform_indices = @transform_3, window_bounds = array<i64: 4, 32>}, {pipeline_mode = #tpu.pipeline_mode<synchronous>, transform_indices = @transform_4, window_bounds = array<i64: 1, 32>}, {pipeline_mode = #tpu.pipeline_mode<synchronous>, transform_indices = @transform_5, window_bounds = array<i64: 1, 32>}, {pipeline_mode = #tpu.pipeline_mode<synchronous>, transform_indices = @transform_6, window_bounds = array<i64: 32, 16>}, {pipeline_mode = #tpu.pipeline_mode<synchronous>, transform_indices = @transform_7, window_bounds = array<i64: 1, 16>}, {pipeline_mode = #tpu.pipeline_mode<synchronous>, transform_indices = @transform_8, window_bounds = array<i64: 16, 64>}, {pipeline_mode = #tpu.pipeline_mode<synchronous>, transform_indices = @transform_9, window_bounds = array<i64: 1, 64>}, {pipeline_mode = #tpu.pipeline_mode<synchronous>, transform_indices = @transform_10, window_bounds = array<i64: 64, 32>}, {pipeline_mode = #tpu.pipeline_mode<synchronous>, transform_indices = @transform_11, window_bounds = array<i64: 1, 32>}, {pipeline_mode = #tpu.pipeline_mode<synchronous>, transform_indices = @transform_12, window_bounds = array<i64: 32, 128>}, {pipeline_mode = #tpu.pipeline_mode<synchronous>, transform_indices = @transform_13, window_bounds = array<i64: 1, 128>}, {transform_indices = @transform_14, window_bounds = array<i64: 2, 128>}]} {
    %c0 = arith.constant 0 : index
    %c0_0 = arith.constant 0 : index
    %0 = vector.load %arg1[%c0, %c0_0] : memref<16x4xf32, #tpu.memory_space<vmem>>, vector<16x4xf32>
    %1 = vector.extract_strided_slice %0 {offsets = [0, 0], sizes = [16, 1], strides = [1, 1]} : vector<16x4xf32> to vector<16x1xf32>
    %2 = vector.extract_strided_slice %0 {offsets = [0, 1], sizes = [16, 1], strides = [1, 1]} : vector<16x4xf32> to vector<16x1xf32>
    %3 = vector.extract_strided_slice %0 {offsets = [0, 2], sizes = [16, 1], strides = [1, 1]} : vector<16x4xf32> to vector<16x1xf32>
    %c0_1 = arith.constant 0 : index
    %c0_2 = arith.constant 0 : index
    %4 = vector.load %arg3[%c0_1, %c0_2] : memref<4x32xf32, #tpu.memory_space<vmem>>, vector<4x32xf32>
    %c0_3 = arith.constant 0 : index
    %c0_4 = arith.constant 0 : index
    %5 = vector.load %arg4[%c0_3, %c0_4] : memref<4x32xf32, #tpu.memory_space<vmem>>, vector<4x32xf32>
    %cst = arith.constant 1.000000e+00 : f32
    %6 = vector.broadcast %cst : f32 to vector<16x1xf32>
    %7 = arith.cmpf oeq, %1, %6 : vector<16x1xf32>
    %8 = vector.extract_strided_slice %4 {offsets = [0, 0], sizes = [1, 32], strides = [1, 1]} : vector<4x32xf32> to vector<1x32xf32>
    %cst_5 = arith.constant 2.000000e+00 : f32
    %9 = vector.broadcast %cst_5 : f32 to vector<16x1xf32>
    %10 = arith.cmpf oeq, %1, %9 : vector<16x1xf32>
    %11 = vector.extract_strided_slice %4 {offsets = [1, 0], sizes = [1, 32], strides = [1, 1]} : vector<4x32xf32> to vector<1x32xf32>
    %cst_6 = arith.constant 3.000000e+00 : f32
    %12 = vector.broadcast %cst_6 : f32 to vector<16x1xf32>
    %13 = arith.cmpf oeq, %1, %12 : vector<16x1xf32>
    %14 = vector.extract_strided_slice %4 {offsets = [2, 0], sizes = [1, 32], strides = [1, 1]} : vector<4x32xf32> to vector<1x32xf32>
    %15 = vector.extract_strided_slice %4 {offsets = [3, 0], sizes = [1, 32], strides = [1, 1]} : vector<4x32xf32> to vector<1x32xf32>
    %16 = vector.shape_cast %13 : vector<16x1xi1> to vector<16x1xi1>
    %17 = vector.broadcast %16 : vector<16x1xi1> to vector<16x32xi1>
    %18 = vector.shape_cast %14 : vector<1x32xf32> to vector<1x32xf32>
    %19 = vector.broadcast %18 : vector<1x32xf32> to vector<16x32xf32>
    %20 = vector.shape_cast %15 : vector<1x32xf32> to vector<1x32xf32>
    %21 = vector.broadcast %20 : vector<1x32xf32> to vector<16x32xf32>
    %22 = arith.select %17, %19, %21 : vector<16x32xi1>, vector<16x32xf32>
    %23 = vector.shape_cast %10 : vector<16x1xi1> to vector<16x1xi1>
    %24 = vector.broadcast %23 : vector<16x1xi1> to vector<16x32xi1>
    %25 = vector.shape_cast %11 : vector<1x32xf32> to vector<1x32xf32>
    %26 = vector.broadcast %25 : vector<1x32xf32> to vector<16x32xf32>
    %27 = arith.select %24, %26, %22 : vector<16x32xi1>, vector<16x32xf32>
    %28 = vector.shape_cast %7 : vector<16x1xi1> to vector<16x1xi1>
    %29 = vector.broadcast %28 : vector<16x1xi1> to vector<16x32xi1>
    %30 = vector.shape_cast %8 : vector<1x32xf32> to vector<1x32xf32>
    %31 = vector.broadcast %30 : vector<1x32xf32> to vector<16x32xf32>
    %32 = arith.select %29, %31, %27 : vector<16x32xi1>, vector<16x32xf32>
    %cst_7 = arith.constant 1.000000e+00 : f32
    %33 = vector.broadcast %cst_7 : f32 to vector<16x1xf32>
    %34 = arith.cmpf oeq, %2, %33 : vector<16x1xf32>
    %35 = vector.extract_strided_slice %5 {offsets = [0, 0], sizes = [1, 32], strides = [1, 1]} : vector<4x32xf32> to vector<1x32xf32>
    %cst_8 = arith.constant 2.000000e+00 : f32
    %36 = vector.broadcast %cst_8 : f32 to vector<16x1xf32>
    %37 = arith.cmpf oeq, %2, %36 : vector<16x1xf32>
    %38 = vector.extract_strided_slice %5 {offsets = [1, 0], sizes = [1, 32], strides = [1, 1]} : vector<4x32xf32> to vector<1x32xf32>
    %cst_9 = arith.constant 3.000000e+00 : f32
    %39 = vector.broadcast %cst_9 : f32 to vector<16x1xf32>
    %40 = arith.cmpf oeq, %2, %39 : vector<16x1xf32>
    %41 = vector.extract_strided_slice %5 {offsets = [2, 0], sizes = [1, 32], strides = [1, 1]} : vector<4x32xf32> to vector<1x32xf32>
    %42 = vector.extract_strided_slice %5 {offsets = [3, 0], sizes = [1, 32], strides = [1, 1]} : vector<4x32xf32> to vector<1x32xf32>
    %43 = vector.shape_cast %40 : vector<16x1xi1> to vector<16x1xi1>
    %44 = vector.broadcast %43 : vector<16x1xi1> to vector<16x32xi1>
    %45 = vector.shape_cast %41 : vector<1x32xf32> to vector<1x32xf32>
    %46 = vector.broadcast %45 : vector<1x32xf32> to vector<16x32xf32>
    %47 = vector.shape_cast %42 : vector<1x32xf32> to vector<1x32xf32>
    %48 = vector.broadcast %47 : vector<1x32xf32> to vector<16x32xf32>
    %49 = arith.select %44, %46, %48 : vector<16x32xi1>, vector<16x32xf32>
    %50 = vector.shape_cast %37 : vector<16x1xi1> to vector<16x1xi1>
    %51 = vector.broadcast %50 : vector<16x1xi1> to vector<16x32xi1>
    %52 = vector.shape_cast %38 : vector<1x32xf32> to vector<1x32xf32>
    %53 = vector.broadcast %52 : vector<1x32xf32> to vector<16x32xf32>
    %54 = arith.select %51, %53, %49 : vector<16x32xi1>, vector<16x32xf32>
    %55 = vector.shape_cast %34 : vector<16x1xi1> to vector<16x1xi1>
    %56 = vector.broadcast %55 : vector<16x1xi1> to vector<16x32xi1>
    %57 = vector.shape_cast %35 : vector<1x32xf32> to vector<1x32xf32>
    %58 = vector.broadcast %57 : vector<1x32xf32> to vector<16x32xf32>
    %59 = arith.select %56, %58, %54 : vector<16x32xi1>, vector<16x32xf32>
    %c0_10 = arith.constant 0 : index
    %c0_11 = arith.constant 0 : index
    %60 = vector.load %arg5[%c0_10, %c0_11] : memref<1x32xf32, #tpu.memory_space<vmem>>, vector<1x32xf32>
    %61 = vector.broadcast %3 : vector<16x1xf32> to vector<16x32xf32>
    %62 = vector.broadcast %60 : vector<1x32xf32> to vector<16x32xf32>
    %63 = arith.mulf %61, %62 : vector<16x32xf32>
    %c0_12 = arith.constant 0 : index
    %c0_13 = arith.constant 0 : index
    %64 = vector.load %arg6[%c0_12, %c0_13] : memref<1x32xf32, #tpu.memory_space<vmem>>, vector<1x32xf32>
    %65 = vector.broadcast %64 : vector<1x32xf32> to vector<16x32xf32>
    %66 = arith.addf %63, %65 : vector<16x32xf32>
    %67 = arith.addf %66, %32 : vector<16x32xf32>
    %68 = arith.addf %67, %59 : vector<16x32xf32>
    %cst_14 = arith.constant 0.000000e+00 : f32
    %69 = vector.broadcast %cst_14 : f32 to vector<16x32xf32>
    %70 = arith.maximumf %68, %69 : vector<16x32xf32>
    %c0_15 = arith.constant 0 : index
    %c0_16 = arith.constant 0 : index
    %71 = vector.load %arg7[%c0_15, %c0_16] : memref<32x16xf32, #tpu.memory_space<vmem>>, vector<32x16xf32>
    %cst_17 = arith.constant dense<0.000000e+00> : vector<16x16xf32>
    %72 = tpu.matmul %70, %71, %cst_17 {dimension_numbers = #tpu.dot_dimension_numbers<[1], [0], [0], [1], [0, 0, 1, 1], [], []>} : vector<16x32xf32>, vector<32x16xf32>, vector<16x16xf32> -> vector<16x16xf32>
    %c0_18 = arith.constant 0 : index
    %c0_19 = arith.constant 0 : index
    %73 = vector.load %arg8[%c0_18, %c0_19] : memref<1x16xf32, #tpu.memory_space<vmem>>, vector<1x16xf32>
    %74 = vector.broadcast %73 : vector<1x16xf32> to vector<16x16xf32>
    %75 = arith.addf %72, %74 : vector<16x16xf32>
    %cst_20 = arith.constant 0.000000e+00 : f32
    %76 = vector.broadcast %cst_20 : f32 to vector<16x16xf32>
    %77 = arith.maximumf %75, %76 : vector<16x16xf32>
    %c0_21 = arith.constant 0 : index
    %c0_22 = arith.constant 0 : index
    %78 = vector.load %arg2[%c0_21, %c0_22] : memref<2x1xf32, #tpu.memory_space<vmem>>, vector<2x1xf32>
    %79 = tpu.iota {dimensions = array<i32: 1>} : vector<2x8x1xi32>
    %80 = arith.sitofp %79 : vector<2x8x1xi32> to vector<2x8x1xf32>
    %81 = vector.shape_cast %78 : vector<2x1xf32> to vector<2x1x1xf32>
    %82 = vector.broadcast %81 : vector<2x1x1xf32> to vector<2x8x1xf32>
    %83 = arith.cmpf olt, %80, %82 : vector<2x8x1xf32>
    %84 = vector.shape_cast %77 : vector<16x16xf32> to vector<2x8x16xf32>
    %cst_23 = arith.constant 0.000000e+00 : f32
    %85 = vector.shape_cast %83 : vector<2x8x1xi1> to vector<2x8x1xi1>
    %86 = vector.broadcast %85 : vector<2x8x1xi1> to vector<2x8x16xi1>
    %87 = vector.broadcast %cst_23 : f32 to vector<2x8x16xf32>
    %88 = arith.select %86, %84, %87 : vector<2x8x16xi1>, vector<2x8x16xf32>
    %cst_24 = arith.constant dense<0.000000e+00> : vector<2x16xf32>
    %89 = vector.multi_reduction <add>, %88, %cst_24 [1] : vector<2x8x16xf32> to vector<2x16xf32>
    %90 = vector.broadcast %78 : vector<2x1xf32> to vector<2x16xf32>
    %91 = arith.divf %89, %90 : vector<2x16xf32>
    %c0_25 = arith.constant 0 : index
    %c0_26 = arith.constant 0 : index
    %92 = vector.load %arg9[%c0_25, %c0_26] : memref<16x64xf32, #tpu.memory_space<vmem>>, vector<16x64xf32>
    %cst_27 = arith.constant dense<0.000000e+00> : vector<2x64xf32>
    %93 = tpu.matmul %91, %92, %cst_27 {dimension_numbers = #tpu.dot_dimension_numbers<[1], [0], [0], [1], [0, 0, 1, 1], [], []>} : vector<2x16xf32>, vector<16x64xf32>, vector<2x64xf32> -> vector<2x64xf32>
    %c0_28 = arith.constant 0 : index
    %c0_29 = arith.constant 0 : index
    %94 = vector.load %arg10[%c0_28, %c0_29] : memref<1x64xf32, #tpu.memory_space<vmem>>, vector<1x64xf32>
    %95 = vector.broadcast %94 : vector<1x64xf32> to vector<2x64xf32>
    %96 = arith.addf %93, %95 : vector<2x64xf32>
    %cst_30 = arith.constant 0.000000e+00 : f32
    %97 = vector.broadcast %cst_30 : f32 to vector<2x64xf32>
    %98 = arith.maximumf %96, %97 : vector<2x64xf32>
    %c0_31 = arith.constant 0 : index
    %c0_32 = arith.constant 0 : index
    %99 = vector.load %arg11[%c0_31, %c0_32] : memref<64x32xf32, #tpu.memory_space<vmem>>, vector<64x32xf32>
    %cst_33 = arith.constant dense<0.000000e+00> : vector<2x32xf32>
    %100 = tpu.matmul %98, %99, %cst_33 {dimension_numbers = #tpu.dot_dimension_numbers<[1], [0], [0], [1], [0, 0, 1, 1], [], []>} : vector<2x64xf32>, vector<64x32xf32>, vector<2x32xf32> -> vector<2x32xf32>
    %c0_34 = arith.constant 0 : index
    %c0_35 = arith.constant 0 : index
    %101 = vector.load %arg12[%c0_34, %c0_35] : memref<1x32xf32, #tpu.memory_space<vmem>>, vector<1x32xf32>
    %102 = vector.broadcast %101 : vector<1x32xf32> to vector<2x32xf32>
    %103 = arith.addf %100, %102 : vector<2x32xf32>
    %cst_36 = arith.constant 0.000000e+00 : f32
    %104 = vector.broadcast %cst_36 : f32 to vector<2x32xf32>
    %105 = arith.maximumf %103, %104 : vector<2x32xf32>
    %c0_37 = arith.constant 0 : index
    %c0_38 = arith.constant 0 : index
    %106 = vector.load %arg13[%c0_37, %c0_38] : memref<32x128xf32, #tpu.memory_space<vmem>>, vector<32x128xf32>
    %cst_39 = arith.constant dense<0.000000e+00> : vector<2x128xf32>
    %107 = tpu.matmul %105, %106, %cst_39 {dimension_numbers = #tpu.dot_dimension_numbers<[1], [0], [0], [1], [0, 0, 1, 1], [], []>} : vector<2x32xf32>, vector<32x128xf32>, vector<2x128xf32> -> vector<2x128xf32>
    %c0_40 = arith.constant 0 : index
    %c0_41 = arith.constant 0 : index
    %108 = vector.load %arg14[%c0_40, %c0_41] : memref<1x128xf32, #tpu.memory_space<vmem>>, vector<1x128xf32>
    %109 = vector.broadcast %108 : vector<1x128xf32> to vector<2x128xf32>
    %110 = arith.addf %107, %109 : vector<2x128xf32>
    %cst_42 = arith.constant 2.000000e+01 : f32
    %111 = vector.broadcast %cst_42 : f32 to vector<2x128xf32>
    %112 = arith.cmpf ogt, %110, %111 : vector<2x128xf32>
    %cst_43 = arith.constant 2.000000e+01 : f32
    %113 = vector.broadcast %cst_43 : f32 to vector<2x128xf32>
    %114 = arith.minimumf %110, %113 : vector<2x128xf32>
    %115 = math.exp %114 : vector<2x128xf32>
    %116 = math.log1p %115 : vector<2x128xf32>
    %117 = arith.select %112, %110, %116 : vector<2x128xi1>, vector<2x128xf32>
    %c0_44 = arith.constant 0 : index
    %c0_45 = arith.constant 0 : index
    %118 = vector.load %arg15[%c0_44, %c0_45] : memref<2x128xf32, #tpu.memory_space<vmem>>, vector<2x128xf32>
    tpu.vector_store %arg15[%c0_44, %c0_45], %117 {strides = array<i32>} : memref<2x128xf32, #tpu.memory_space<vmem>>, vector<2x128xf32>,
    return
  }
  func.func @transform_0(%arg0: i32) -> (i32, i32) {
    %c0_i32 = arith.constant 0 : i32
    %c0_i32_0 = arith.constant 0 : i32
    return %arg0, %c0_i32 : i32, i32
  }
  func.func @transform_1(%arg0: i32) -> (i32, i32) {
    %c0_i32 = arith.constant 0 : i32
    %c0_i32_0 = arith.constant 0 : i32
    return %arg0, %c0_i32 : i32, i32
  }
  func.func @transform_2(%arg0: i32) -> (i32, i32) {
    %c0_i32 = arith.constant 0 : i32
    %c0_i32_0 = arith.constant 0 : i32
    %c0_i32_1 = arith.constant 0 : i32
    return %c0_i32, %c0_i32_0 : i32, i32
  }
  func.func @transform_3(%arg0: i32) -> (i32, i32) {
    %c0_i32 = arith.constant 0 : i32
    %c0_i32_0 = arith.constant 0 : i32
    %c0_i32_1 = arith.constant 0 : i32
    return %c0_i32, %c0_i32_0 : i32, i32
  }
  func.func @transform_4(%arg0: i32) -> (i32, i32) {
    %c0_i32 = arith.constant 0 : i32
    %c0_i32_0 = arith.constant 0 : i32
    %c0_i32_1 = arith.constant 0 : i32
    return %c0_i32, %c0_i32_0 : i32, i32
  }
  func.func @transform_5(%arg0: i32) -> (i32, i32) {
    %c0_i32 = arith.constant 0 : i32
    %c0_i32_0 = arith.constant 0 : i32
    %c0_i32_1 = arith.constant 0 : i32
    return %c0_i32, %c0_i32_0 : i32, i32
  }
  func.func @transform_6(%arg0: i32) -> (i32, i32) {
    %c0_i32 = arith.constant 0 : i32
    %c0_i32_0 = arith.constant 0 : i32
    %c0_i32_1 = arith.constant 0 : i32
    return %c0_i32, %c0_i32_0 : i32, i32
  }
  func.func @transform_7(%arg0: i32) -> (i32, i32) {
    %c0_i32 = arith.constant 0 : i32
    %c0_i32_0 = arith.constant 0 : i32
    %c0_i32_1 = arith.constant 0 : i32
    return %c0_i32, %c0_i32_0 : i32, i32
  }
  func.func @transform_8(%arg0: i32) -> (i32, i32) {
    %c0_i32 = arith.constant 0 : i32
    %c0_i32_0 = arith.constant 0 : i32
    %c0_i32_1 = arith.constant 0 : i32
    return %c0_i32, %c0_i32_0 : i32, i32
  }
  func.func @transform_9(%arg0: i32) -> (i32, i32) {
    %c0_i32 = arith.constant 0 : i32
    %c0_i32_0 = arith.constant 0 : i32
    %c0_i32_1 = arith.constant 0 : i32
    return %c0_i32, %c0_i32_0 : i32, i32
  }
  func.func @transform_10(%arg0: i32) -> (i32, i32) {
    %c0_i32 = arith.constant 0 : i32
    %c0_i32_0 = arith.constant 0 : i32
    %c0_i32_1 = arith.constant 0 : i32
    return %c0_i32, %c0_i32_0 : i32, i32
  }
  func.func @transform_11(%arg0: i32) -> (i32, i32) {
    %c0_i32 = arith.constant 0 : i32
    %c0_i32_0 = arith.constant 0 : i32
    %c0_i32_1 = arith.constant 0 : i32
    return %c0_i32, %c0_i32_0 : i32, i32
  }
  func.func @transform_12(%arg0: i32) -> (i32, i32) {
    %c0_i32 = arith.constant 0 : i32
    %c0_i32_0 = arith.constant 0 : i32
    %c0_i32_1 = arith.constant 0 : i32
    return %c0_i32, %c0_i32_0 : i32, i32
  }
  func.func @transform_13(%arg0: i32) -> (i32, i32) {
    %c0_i32 = arith.constant 0 : i32
    %c0_i32_0 = arith.constant 0 : i32
    %c0_i32_1 = arith.constant 0 : i32
    return %c0_i32, %c0_i32_0 : i32, i32
  }
  func.func @transform_14(%arg0: i32) -> (i32, i32) {
    %c0_i32 = arith.constant 0 : i32
    %c0_i32_0 = arith.constant 0 : i32
    return %arg0, %c0_i32 : i32, i32
  }
}

</mosaic_0001>

<llo_original>
// kernel: tpu_custom_call.1
$region0: #{tpu_custom_call.1}
  #allocation0 [shape = 'u32[]', space=smem, size = 0x4, offset = 0x4, fixed_abs, tag = 'smem constant byte address 0x4 - core index']
  #allocation1 [shape = 'u32[72,128]{1,0:T(1,128)}', space=vmem, size = 0x9000, scoped, tag = 'internal scratch']
  %s0 = inlined_call_operand.vmem [shape: f32[16,4], index: 0, kind: input, shape index: {}]
  %s1 = inlined_call_operand.vmem [shape: f32[2,1], index: 1, kind: input, shape index: {}]
  %s2 = inlined_call_operand.vmem [shape: f32[4,32], index: 2, kind: input, shape index: {}]
  %s3 = inlined_call_operand.vmem [shape: f32[4,32], index: 3, kind: input, shape index: {}]
  %s4 = inlined_call_operand.vmem [shape: f32[1,32], index: 4, kind: input, shape index: {}]
  %s5 = inlined_call_operand.vmem [shape: f32[1,32], index: 5, kind: input, shape index: {}]
  %s6 = inlined_call_operand.vmem [shape: f32[32,16], index: 6, kind: input, shape index: {}]
  %s7 = inlined_call_operand.vmem [shape: f32[1,16], index: 7, kind: input, shape index: {}]
  %s8 = inlined_call_operand.vmem [shape: f32[16,64], index: 8, kind: input, shape index: {}]
  %s9 = inlined_call_operand.vmem [shape: f32[1,64], index: 9, kind: input, shape index: {}]
  %s10 = inlined_call_operand.vmem [shape: f32[64,32], index: 10, kind: input, shape index: {}]
  %s11 = inlined_call_operand.vmem [shape: f32[1,32], index: 11, kind: input, shape index: {}]
  %s12 = inlined_call_operand.vmem [shape: f32[32,128], index: 12, kind: input, shape index: {}]
  %s13 = inlined_call_operand.vmem [shape: f32[1,128], index: 13, kind: input, shape index: {}]
  %s14 = inlined_call_operand.hbm [shape: f32[2,128], index: 14, kind: output, shape index: {}]
  %s15 = sld [smem:[#allocation0]]
  $region66: #{tpu_custom_call.1} parent=0
    _
  %s17 = ssub.s32 1, %s15
  %s18 = scalar_select 0, %s17, %s15
  $region1: #{tpu_custom_call.1} parent=0
    #allocation2 [shape = 'u8[1024]{0}', space=vmem, size = 0x400, scoped, tag = 'output window, operand 0, single buffered']
    #allocation3 [shape = 's32[1]{0}', space=sflag, size = 0x4, scoped, tag = 'scoped memory for tpu_custom_call.1']
    %19 = vsyncpa [#allocation3], 0
    // Predicated region
    $region2: #{tpu_custom_call.1} parent=1 // pred_check
      _
    $region3: #{tpu_custom_call.1} parent=1 // pred_check_branch
      %21 = sbr.rel (0) target = $region5
    $region4: #{tpu_custom_call.1} parent=1 // pred_region
      _
    $region5: #{tpu_custom_call.1} parent=1 // pred_fallthru
      _
    // Predicated region
    $region6: #{tpu_custom_call.1} parent=1 // pred_check
      _
    $region7: #{tpu_custom_call.1} parent=1 // pred_check_branch
      %23 = sbr.rel (0) target = $region9
    $region8: #{tpu_custom_call.1} parent=1 // pred_region
      _
    $region9: #{tpu_custom_call.1} parent=1 // pred_fallthru
      _
    // Predicated region
    $region10: #{tpu_custom_call.1} parent=1 // pred_check
      _
    $region11: #{tpu_custom_call.1} parent=1 // pred_check_branch
      %25 = sbr.rel (0) target = $region13
    $region12: #{tpu_custom_call.1} parent=1 // pred_region
      _
    $region13: #{tpu_custom_call.1} parent=1 // pred_fallthru
      _
    // Predicated region
    $region14: #{tpu_custom_call.1} parent=1 // pred_check
      _
    $region15: #{tpu_custom_call.1} parent=1 // pred_check_branch
      %27 = sbr.rel (0) target = $region17
    $region16: #{tpu_custom_call.1} parent=1 // pred_region
      _
    $region17: #{tpu_custom_call.1} parent=1 // pred_fallthru
      _
    // Predicated region
    $region18: #{tpu_custom_call.1} parent=1 // pred_check
      _
    $region19: #{tpu_custom_call.1} parent=1 // pred_check_branch
      %29 = sbr.rel (0) target = $region21
    $region20: #{tpu_custom_call.1} parent=1 // pred_region
      _
    $region21: #{tpu_custom_call.1} parent=1 // pred_fallthru
      _
    // Predicated region
    $region22: #{tpu_custom_call.1} parent=1 // pred_check
      _
    $region23: #{tpu_custom_call.1} parent=1 // pred_check_branch
      %31 = sbr.rel (0) target = $region25
    $region24: #{tpu_custom_call.1} parent=1 // pred_region
      _
    $region25: #{tpu_custom_call.1} parent=1 // pred_fallthru
      _
    // Predicated region
    $region26: #{tpu_custom_call.1} parent=1 // pred_check
      _
    $region27: #{tpu_custom_call.1} parent=1 // pred_check_branch
      %33 = sbr.rel (0) target = $region29
    $region28: #{tpu_custom_call.1} parent=1 // pred_region
      _
    $region29: #{tpu_custom_call.1} parent=1 // pred_fallthru
      _
    // Predicated region
    $region30: #{tpu_custom_call.1} parent=1 // pred_check
      _
    $region31: #{tpu_custom_call.1} parent=1 // pred_check_branch
      %35 = sbr.rel (0) target = $region33
    $region32: #{tpu_custom_call.1} parent=1 // pred_region
      _
    $region33: #{tpu_custom_call.1} parent=1 // pred_fallthru
      _
    // Predicated region
    $region34: #{tpu_custom_call.1} parent=1 // pred_check
      _
    $region35: #{tpu_custom_call.1} parent=1 // pred_check_branch
      %37 = sbr.rel (0) target = $region37
    $region36: #{tpu_custom_call.1} parent=1 // pred_region
      _
    $region37: #{tpu_custom_call.1} parent=1 // pred_fallthru
      _
    // Predicated region
    $region38: #{tpu_custom_call.1} parent=1 // pred_check
      _
    $region39: #{tpu_custom_call.1} parent=1 // pred_check_branch
      %39 = sbr.rel (0) target = $region41
    $region40: #{tpu_custom_call.1} parent=1 // pred_region
      _
    $region41: #{tpu_custom_call.1} parent=1 // pred_fallthru
      _
    // Predicated region
    $region42: #{tpu_custom_call.1} parent=1 // pred_check
      _
    $region43: #{tpu_custom_call.1} parent=1 // pred_check_branch
      %41 = sbr.rel (0) target = $region45
    $region44: #{tpu_custom_call.1} parent=1 // pred_region
      _
    $region45: #{tpu_custom_call.1} parent=1 // pred_fallthru
      _
    // Predicated region
    $region46: #{tpu_custom_call.1} parent=1 // pred_check
      _
    $region47: #{tpu_custom_call.1} parent=1 // pred_check_branch
      %43 = sbr.rel (0) target = $region49
    $region48: #{tpu_custom_call.1} parent=1 // pred_region
      _
    $region49: #{tpu_custom_call.1} parent=1 // pred_fallthru
      _
    // Predicated region
    $region50: #{tpu_custom_call.1} parent=1 // pred_check
      _
    $region51: #{tpu_custom_call.1} parent=1 // pred_check_branch
      %45 = sbr.rel (0) target = $region53
    $region52: #{tpu_custom_call.1} parent=1 // pred_region
      _
    $region53: #{tpu_custom_call.1} parent=1 // pred_fallthru
      _
    // Predicated region
    $region54: #{tpu_custom_call.1} parent=1 // pred_check
      _
    $region55: #{tpu_custom_call.1} parent=1 // pred_check_branch
      %47 = sbr.rel (0) target = $region57
    $region56: #{tpu_custom_call.1} parent=1 // pred_region
      _
    $region57: #{tpu_custom_call.1} parent=1 // pred_fallthru
      _
    %v48 = vld [vmem:[%s0] sm:$0xff]
    %v49 = vld [vmem:[%s0 + $0x8] sm:$0xff]
    %v50 = vld [vmem:[%s2] sm:$0xf]
    %v51 = vld [vmem:[%s3] sm:$0xf]
    %vm52 = vcmp.eq.f32.partialorder %v48, 1.0
    %vm53 = vcmp.eq.f32.partialorder %v49, 1.0
    %vm54 = vcmp.eq.f32.partialorder %v48, 2.0
    %vm55 = vcmp.eq.f32.partialorder %v49, 2.0
    %vm56 = vcmp.eq.f32.partialorder %v48, 3.0
    %vm57 = vcmp.eq.f32.partialorder %v49, 3.0
    %v58 = vsel %vm56, 1, 0
    %v59 = vsel %vm57, 1, 0
    %60 = vset.pattern.permute.xlu0 0
    %61 = vperm.xlu0 %60, %v58
    %v62 = vpop.permute.xlu0 %61
    %63 = vset.pattern.permute.xlu0 0
    %64 = vperm.xlu0 %63, %v59
    %v65 = vpop.permute.xlu0 %64
    %vm66 = vcmp.eq.s32.totalorder %v62, 1
    %vm67 = vcmp.eq.s32.totalorder %v65, 1
    %v68 = vperm.slane %v50, 2
    %v69 = vperm.slane %v50, 3
    %v70 = vsel %vm66, %v68, %v69
    %v71 = vsel %vm67, %v68, %v69
    %v72 = vsel %vm54, 1, 0
    %v73 = vsel %vm55, 1, 0
    %74 = vset.pattern.permute.xlu0 0
    %75 = vperm.xlu0 %74, %v72
    %v76 = vpop.permute.xlu0 %75
    %77 = vset.pattern.permute.xlu0 0
    %78 = vperm.xlu0 %77, %v73
    %v79 = vpop.permute.xlu0 %78
    %vm80 = vcmp.eq.s32.totalorder %v76, 1
    %vm81 = vcmp.eq.s32.totalorder %v79, 1
    %v82 = vperm.slane %v50, 1
    %v83 = vsel %vm80, %v82, %v70
    %v84 = vsel %vm81, %v82, %v71
    %v85 = vsel %vm52, 1, 0
    %v86 = vsel %vm53, 1, 0
    %87 = vset.pattern.permute.xlu0 0
    %88 = vperm.xlu0 %87, %v85
    %v89 = vpop.permute.xlu0 %88
    %90 = vset.pattern.permute.xlu0 0
    %91 = vperm.xlu0 %90, %v86
    %v92 = vpop.permute.xlu0 %91
    %vm93 = vcmp.eq.s32.totalorder %v89, 1
    %vm94 = vcmp.eq.s32.totalorder %v92, 1
    %v95 = vperm.slane %v50, 0
    %v96 = vsel %vm93, %v95, %v83
    %v97 = vsel %vm94, %v95, %v84
    %98 = vset.pattern.permute.xlu0 1
    %99 = vperm.xlu0 %98, %v58
    %v100 = vpop.permute.xlu0 %99
    %101 = vset.pattern.permute.xlu0 1
    %102 = vperm.xlu0 %101, %v59
    %v103 = vpop.permute.xlu0 %102
    %vm104 = vcmp.eq.s32.totalorder %v100, 1
    %vm105 = vcmp.eq.s32.totalorder %v103, 1
    %v106 = vperm.slane %v51, 2
    %v107 = vperm.slane %v51, 3
    %v108 = vsel %vm104, %v106, %v107
    %v109 = vsel %vm105, %v106, %v107
    %110 = vset.pattern.permute.xlu0 1
    %111 = vperm.xlu0 %110, %v72
    %v112 = vpop.permute.xlu0 %111
    %113 = vset.pattern.permute.xlu0 1
    %114 = vperm.xlu0 %113, %v73
    %v115 = vpop.permute.xlu0 %114
    %vm116 = vcmp.eq.s32.totalorder %v112, 1
    %vm117 = vcmp.eq.s32.totalorder %v115, 1
    %v118 = vperm.slane %v51, 1
    %v119 = vsel %vm116, %v118, %v108
    %v120 = vsel %vm117, %v118, %v109
    %121 = vset.pattern.permute.xlu0 1
    %122 = vperm.xlu0 %121, %v85
    %v123 = vpop.permute.xlu0 %122
    %124 = vset.pattern.permute.xlu0 1
    %125 = vperm.xlu0 %124, %v86
    %v126 = vpop.permute.xlu0 %125
    %vm127 = vcmp.eq.s32.totalorder %v123, 1
    %vm128 = vcmp.eq.s32.totalorder %v126, 1
    %v129 = vperm.slane %v51, 0
    %v130 = vsel %vm127, %v129, %v119
    %v131 = vsel %vm128, %v129, %v120
    %v132 = vld [vmem:[%s4] sm:$0x1]
    %134 = vset.pattern.permute.xlu0 2
    %135 = vperm.xlu0 %134, %v48
    %v136 = vpop.permute.xlu0 %135
    %139 = vset.pattern.permute.xlu0 2
    %140 = vperm.xlu0 %139, %v49
    %v141 = vpop.permute.xlu0 %140
    %v144 = vperm.slane %v132, 0
    %v146 = vmul.f32 %v136, %v144
    %v147 = vmul.f32 %v141, %v144
    %v148 = vld [vmem:[%s5] sm:$0x1]
    %v150 = vperm.slane %v148, 0
    %v152 = vadd.f32 %v146, %v150
    %v153 = vadd.f32 %v147, %v150
    %v154 = vadd.f32 %v152, %v96
    %v155 = vadd.f32 %v153, %v97
    %v156 = vadd.f32 %v154, %v130
    %v157 = vadd.f32 %v155, %v131
    %v158 = vmax.f32 %v156, 0.0
    %v159 = vmax.f32 %v157, 0.0
    %v160 = vld [vmem:[%s6] sm:$0xff]
    %v161 = vld [vmem:[%s6 + $0x8] sm:$0xff]
    %v162 = vld [vmem:[%s6 + $0x10] sm:$0xff]
    %v163 = vld [vmem:[%s6 + $0x18] sm:$0xff]
    %v164 = vld [vmem:[%s7] sm:$0x1]
    %v166 = vperm.slane %v164, 0
    %vm168 = vcmask 261120
    %v170 = vsel %vm168, %v158, 0
    %v173 = vsel %vm168, %v159, 0
    %175 = vmatpush.msra.mxu0 0.0
    %176 = vmatpush.msra.mxu0 0.0
    %177 = vmatpush.msra.mxu0 0.0
    %178 = vmatpush.msra.mxu0 0.0
    %179 = vmatpush.msra.mxu0 0.0
    %180 = vmatpush.msra.mxu0 0.0
    %181 = vmatpush.msra.mxu0 0.0
    %182 = vmatpush.msra.mxu0 0.0
    %183 = vmatpush.msra.mxu0 0.0
    %184 = vmatpush.msra.mxu0 0.0
    %185 = vmatpush.msra.mxu0 0.0
    %186 = vmatpush.msra.mxu0 0.0
    %187 = vmatpush.msra.mxu0 %v163
    %188 = vmatpush.msra.mxu0 %v162
    %189 = vmatpush.msra.mxu0 %v161
    %190 = vmatpush.msra.mxu0 %v160
    %191 = vmatmul.f32.gmra.mxu0 %v170
    %v192 = vpop.f32.mrf.mxu0
    %v193 = vadd.f32 %v166, %v192
    %194 = vmatmul.f32.gmra.mxu0 %v173
    %v195 = vpop.f32.mrf.mxu0
    %v196 = vadd.f32 %v166, %v195
    %197 = vdwg.mxu0
    %v198 = vmax.f32 %v193, 0.0
    %v199 = vmax.f32 %v196, 0.0
    %v200 = vld [vmem:[%s1] sm:$0x3]
    %v201 = vlaneseq
    %v202 = vshrl.u32 %v201, 7
    %v203 = vcvt.s32.f32 %v202
    %v205 = vrot.slane %v200, 1
    %v206 = vperm.slane %v200, 0
    %v207 = vperm.slane %v205, 0
    %vm210 = vcmp.lt.f32.partialorder %v203, %v206
    %vm211 = vcmp.lt.f32.partialorder %v203, %v207
    %v212 = vsel %vm210, 1, 0
    %v213 = vsel %vm211, 1, 0
    %214 = vset.pattern.permute.xlu0 0
    %215 = vperm.xlu0 %214, %v212
    %v216 = vpop.permute.xlu0 %215
    %217 = vset.pattern.permute.xlu0 0
    %218 = vperm.xlu0 %217, %v213
    %v219 = vpop.permute.xlu0 %218
    %vm220 = vcmp.eq.s32.totalorder %v216, 1
    %vm221 = vcmp.eq.s32.totalorder %v219, 1
    %v222 = vsel %vm220, %v198, 0.0
    %v223 = vsel %vm221, %v199, 0.0
    %vm224 = vcmask 130048
    %v225 = vsel %vm224, %v222, 0.0
    %v226 = vrot.slane %v225, 4
    %v227 = vadd.f32 %v225, %v226
    %v228 = vrot.slane %v227, 2
    %v229 = vadd.f32 %v227, %v228
    %v230 = vrot.slane %v229, 1
    %v231 = vadd.f32 %v229, %v230
    %v232 = vsel %vm224, %v223, 0.0
    %v233 = vrot.slane %v232, 4
    %v234 = vadd.f32 %v232, %v233
    %v235 = vrot.slane %v234, 2
    %v236 = vadd.f32 %v234, %v235
    %v237 = vrot.slane %v236, 1
    %v238 = vadd.f32 %v236, %v237
    %239 = vset.pattern.permute.xlu0 0
    %240 = vperm.xlu0 %239, %v200
    %v241 = vpop.permute.xlu0 %240
    %v242 = vrot.slane %v241, 1
    %v245 = vrcp.pop %v241
    %v246 = vmul.f32 %v241, %v245
    %v247 = vsub.f32 1.0, %v246
    %v248 = vmul.f32 %v245, %v247
    %v249 = vadd.f32 %v245, %v248
    %vm250 = vweird.f32 %v241
    %vm251 = vweird.f32 %v245
    %vm252 = vmor %vm250, %vm251
    %v253 = vsel %vm252, %v245, %v249
    %v254 = vand.u32 2147483647, %v241
    %vm255 = vcmp.eq.f32.partialorder %v254, 8.507059e+37
    %v256 = vand.u32 %v241, 2147483648
    %v257 = vor.u32 1.1754944e-38, %v256
    %v258 = vsel %vm255, %v257, %v253
    %v259 = vmul.f32 %v231, %v258
    %v260 = vrcp.pop %v242
    %v261 = vmul.f32 %v242, %v260
    %v262 = vsub.f32 1.0, %v261
    %v263 = vmul.f32 %v260, %v262
    %v264 = vadd.f32 %v260, %v263
    %vm265 = vweird.f32 %v242
    %vm266 = vweird.f32 %v260
    %vm267 = vmor %vm265, %vm266
    %v268 = vsel %vm267, %v260, %v264
    %v269 = vand.u32 2147483647, %v242
    %vm270 = vcmp.eq.f32.partialorder %v269, 8.507059e+37
    %v271 = vand.u32 %v242, 2147483648
    %v272 = vor.u32 1.1754944e-38, %v271
    %v273 = vsel %vm270, %v272, %v268
    %v274 = vmul.f32 %v238, %v273
    %v275 = vld [vmem:[%s8] sm:$0xff]
    %v276 = vld [vmem:[%s8 + $0x8] sm:$0xff]
    %v277 = vld [vmem:[%s9] sm:$0x1]
    %v279 = vperm.slane %v277, 0
    %v283 = vrot.slane %v274, 7
    %vm284 = vcmask 1041409
    %v285 = vsel %vm284, %v283, %v259
    %v286 = vsel %vm224, %v285, 0
    %288 = vmatpush.msra.mxu0 0.0
    %289 = vmatpush.msra.mxu0 0.0
    %290 = vmatpush.msra.mxu0 0.0
    %291 = vmatpush.msra.mxu0 0.0
    %292 = vmatpush.msra.mxu0 0.0
    %293 = vmatpush.msra.mxu0 0.0
    %294 = vmatpush.msra.mxu0 0.0
    %295 = vmatpush.msra.mxu0 0.0
    %296 = vmatpush.msra.mxu0 0.0
    %297 = vmatpush.msra.mxu0 0.0
    %298 = vmatpush.msra.mxu0 0.0
    %299 = vmatpush.msra.mxu0 0.0
    %300 = vmatpush.msra.mxu0 0.0
    %301 = vmatpush.msra.mxu0 0.0
    %302 = vmatpush.msra.mxu0 %v276
    %303 = vmatpush.msra.mxu0 %v275
    %304 = vmatmul.f32.gmra.mxu0 %v286
    %v305 = vpop.f32.mrf.mxu0
    %v306 = vadd.f32 %v279, %v305
    %307 = vdwg.mxu0
    %v308 = vmax.f32 %v306, 0.0
    %v309 = vld [vmem:[%s10] sm:$0xff]
    %v310 = vld [vmem:[%s10 + $0x8] sm:$0xff]
    %v311 = vld [vmem:[%s10 + $0x10] sm:$0xff]
    %v312 = vld [vmem:[%s10 + $0x18] sm:$0xff]
    %v313 = vld [vmem:[%s10 + $0x20] sm:$0xff]
    %v314 = vld [vmem:[%s10 + $0x28] sm:$0xff]
    %v315 = vld [vmem:[%s10 + $0x30] sm:$0xff]
    %v316 = vld [vmem:[%s10 + $0x38] sm:$0xff]
    %v317 = vld [vmem:[%s11] sm:$0x1]
    %v319 = vperm.slane %v317, 0
    %vm321 = vcmask 523264
    %v323 = vsel %vm321, %v308, 0
    %325 = vmatpush.msra.mxu0 0.0
    %326 = vmatpush.msra.mxu0 0.0
    %327 = vmatpush.msra.mxu0 0.0
    %328 = vmatpush.msra.mxu0 0.0
    %329 = vmatpush.msra.mxu0 0.0
    %330 = vmatpush.msra.mxu0 0.0
    %331 = vmatpush.msra.mxu0 0.0
    %332 = vmatpush.msra.mxu0 0.0
    %333 = vmatpush.msra.mxu0 %v316
    %334 = vmatpush.msra.mxu0 %v315
    %335 = vmatpush.msra.mxu0 %v314
    %336 = vmatpush.msra.mxu0 %v313
    %337 = vmatpush.msra.mxu0 %v312
    %338 = vmatpush.msra.mxu0 %v311
    %339 = vmatpush.msra.mxu0 %v310
    %340 = vmatpush.msra.mxu0 %v309
    %341 = vmatmul.f32.gmra.mxu0 %v323
    %v342 = vpop.f32.mrf.mxu0
    %v343 = vadd.f32 %v319, %v342
    %344 = vdwg.mxu0
    %v345 = vmax.f32 %v343, 0.0
    %v346 = vld [vmem:[%s12] sm:$0xff]
    %v347 = vld [vmem:[%s12 + $0x8] sm:$0xff]
    %v348 = vld [vmem:[%s12 + $0x10] sm:$0xff]
    %v349 = vld [vmem:[%s12 + $0x18] sm:$0xff]
    %v350 = vld [vmem:[%s13] sm:$0x1]
    %v352 = vperm.slane %v350, 0
    %v355 = vsel %vm168, %v345, 0
    %357 = vmatpush.msra.mxu0 0.0
    %358 = vmatpush.msra.mxu0 0.0
    %359 = vmatpush.msra.mxu0 0.0
    %360 = vmatpush.msra.mxu0 0.0
    %361 = vmatpush.msra.mxu0 0.0
    %362 = vmatpush.msra.mxu0 0.0
    %363 = vmatpush.msra.mxu0 0.0
    %364 = vmatpush.msra.mxu0 0.0
    %365 = vmatpush.msra.mxu0 0.0
    %366 = vmatpush.msra.mxu0 0.0
    %367 = vmatpush.msra.mxu0 0.0
    %368 = vmatpush.msra.mxu0 0.0
    %369 = vmatpush.msra.mxu0 %v349
    %370 = vmatpush.msra.mxu0 %v348
    %371 = vmatpush.msra.mxu0 %v347
    %372 = vmatpush.msra.mxu0 %v346
    %373 = vmatmul.f32.gmra.mxu0 %v355
    %v374 = vpop.f32.mrf.mxu0
    %v375 = vadd.f32 %v352, %v374
    %376 = vdwg.mxu0
    %vm377 = vcmp.gt.f32.partialorder %v375, 20.0
    %v378 = vmin.f32 %v375, 20.0
    %v379 = vmul.f32 %v378, 1.442695
    %v380 = vpow.pop %v379
    %v381 = vadd.f32 %v380, 1.0
    %v382 = vlog2.pop %v381
    %v383 = vmul.f32 %v382, 0.6931472
    %v384 = vmul.f32 -0.5, %v380
    %v385 = vadd.f32 %v384, 1.0
    %v386 = vmul.f32 %v385, %v380
    %v387 = vand.u32 2147483647, %v380
    %vm388 = vcmp.lt.f32.partialorder %v387, 0.0004427343
    %v389 = vsel %vm388, %v386, %v383
    %v390 = vsel %vm377, %v375, %v389
    %391 = vst [vmem:[#allocation2] sm:$0x3] %v390
    // Predicated region
    $region58: #{tpu_custom_call.1} parent=1 // pred_check
      _
    $region59: #{tpu_custom_call.1} parent=1 // pred_check_branch
      %393 = sbr.rel (0) target = $region61
    $region60: #{tpu_custom_call.1} parent=1 // pred_region
      %395 = vsyncadd [#allocation3], 0
      %s397 = sshll.u32 [#allocation2], 4
      %s398 = int_to_ptr.vmem [resolvable:$true] %s397
      %s399 = sshll.u32 %s14, 4
      %s400 = int_to_ptr.hbm [resolvable:$true] %s399
      %402 = dma.vmem_to_hbm [thread:$0]  %s398, 32, %s400, [#allocation3]
    $region61: #{tpu_custom_call.1} parent=1 // pred_fallthru
      _
    // Predicated region
    $region62: #{tpu_custom_call.1} parent=1 // pred_check
      _
    $region63: #{tpu_custom_call.1} parent=1 // pred_check_branch
      %404 = sbr.rel (0) target = $region65
    $region64: #{tpu_custom_call.1} parent=1 // pred_region
      %406 = dma.done [#allocation3], 32
    $region65: #{tpu_custom_call.1} parent=1 // pred_fallthru
      _
    %407 = vsyncpa [#allocation3], 1

</llo_original>
